<compile_context>
chip_gen: v7x
topology: tpu7x:2x2x1
jax: 0.10.0
libtpu: 0.0.40
codegen_flags: <defaults>
</compile_context>

<pallas_src>
import functools

import jax
import jax.numpy as jnp
from jax import lax
from jax.experimental import pallas as pl
from jax.experimental.pallas import tpu as pltpu


def _round_up(x, m):
    return (x + m - 1) // m * m


# --------------------------- Pallas kernel -----------------------------------

def _swiglu_mlp_kernel(x_ref, wg_ref, wu_ref, wdt_ref, o_ref, acc_ref):
    """Grid = (token_tiles, intermediate_tiles).  Axis 1 is the reduction over
    the intermediate (F) dimension; acc_ref is an f32 VMEM accumulator that is
    resident across it."""
    f = pl.program_id(1)

    @pl.when(f == 0)
    def _():
        acc_ref[...] = jnp.zeros_like(acc_ref)

    x = x_ref[...]                                    # (TILE_T, H), model dtype
    # (TILE_T, H) x (TILE_F, H) -> (TILE_T, TILE_F); contract last dims so the
    # MXU consumes the (out, in)-layout weights directly (no .T materialized).
    dn = (((1,), (1,)), ((), ()))
    g = lax.dot_general(x, wg_ref[...], dn, preferred_element_type=jnp.float32)
    u = lax.dot_general(x, wu_ref[...], dn, preferred_element_type=jnp.float32)
    a = (jax.nn.silu(g) * u).astype(x_ref.dtype)      # f32 elementwise, narrow for MXU
    # (TILE_T, TILE_F) @ (TILE_F, H) -> (TILE_T, H); wdt is down_proj.weight.T
    acc_ref[...] += jnp.dot(a, wdt_ref[...], preferred_element_type=jnp.float32)

    @pl.when(f == pl.num_programs(1) - 1)
    def _():
        o_ref[...] = acc_ref[...].astype(o_ref.dtype)


# --------------------------- Wrapper ------------------------------------------

@functools.partial(jax.jit, static_argnames=("tile_t", "tile_f"))
def deepseek_v3_mlp_forward(x, gate_w, up_w, down_w, *, tile_t=256, tile_f=256):
    """x: (..., H).  gate_w/up_w: (I, H).  down_w: (H, I).  Returns (..., H)."""
    orig_shape = x.shape
    H = orig_shape[-1]
    I = gate_w.shape[0]
    xt = x.reshape(-1, H)
    T = xt.shape[0]

    # Token tiling: keep the sublane constraint (multiple of 8) and pad T.
    tt = min(tile_t, _round_up(T, 8))
    Tp = _round_up(T, tt)
    if Tp != T:
        xt = jnp.pad(xt, ((0, Tp - T), (0, 0)))

    # Intermediate tiling: pick the largest candidate that divides I.
    tf = next((c for c in (tile_f, 512, 256, 128) if c <= I and I % c == 0), I)

    # Pre-transpose the down projection once (outside the kernel).
    down_wt = down_w.T                                # (I, H)

    grid = (Tp // tt, I // tf)
    out = pl.pallas_call(
        _swiglu_mlp_kernel,
        out_shape=jax.ShapeDtypeStruct((Tp, H), x.dtype),
        grid_spec=pltpu.PrefetchScalarGridSpec(
            num_scalar_prefetch=0,
            grid=grid,
            in_specs=[
                pl.BlockSpec((tt, H), lambda t, f: (t, 0)),   # activations
                pl.BlockSpec((tf, H), lambda t, f: (f, 0)),   # gate_proj weight tile
                pl.BlockSpec((tf, H), lambda t, f: (f, 0)),   # up_proj weight tile
                pl.BlockSpec((tf, H), lambda t, f: (f, 0)),   # down_proj.T weight tile
            ],
            out_specs=pl.BlockSpec((tt, H), lambda t, f: (t, 0)),
            scratch_shapes=[pltpu.VMEM((tt, H), jnp.float32)],
        ),
        compiler_params=pltpu.CompilerParams(
            dimension_semantics=("parallel", "arbitrary"),
            vmem_limit_bytes=64 * 1024 * 1024,
        ),
    )(xt, gate_w, up_w, down_wt)

    return out[:T].reshape(orig_shape)


# --------------------------- Pure-JAX reference -------------------------------

def reference_forward(x, gate_w, up_w, down_w):
    """Mirrors the kernel numerics: model-dtype operands, f32 accumulation."""
    hp = lax.Precision.HIGHEST
    H = x.shape[-1]
    xt = x.reshape(-1, H).astype(jnp.float32)
    g = jnp.dot(xt, gate_w.astype(jnp.float32).T, precision=hp)
    u = jnp.dot(xt, up_w.astype(jnp.float32).T, precision=hp)
    a = (jax.nn.silu(g) * u).astype(x.dtype).astype(jnp.float32)
    y = jnp.dot(a, down_w.astype(jnp.float32).T, precision=hp)
    return y.reshape(x.shape)


# --------------------------- Main ---------------------------------------------

if __name__ == "__main__":
    # Small DeepseekV3MLP-style config.
    B, S = 2, 8
    H = 256          # hidden_size
    I = 512          # intermediate_size

    key = jax.random.PRNGKey(0)
    k0, k1, k2, k3 = jax.random.split(key, 4)
    dtype = jnp.bfloat16
    scale_h = 1.0 / jnp.sqrt(H)
    scale_i = 1.0 / jnp.sqrt(I)

    x = jax.random.normal(k0, (B, S, H), jnp.float32).astype(dtype)
    gate_w = (jax.random.normal(k1, (I, H), jnp.float32) * scale_h).astype(dtype)
    up_w = (jax.random.normal(k2, (I, H), jnp.float32) * scale_h).astype(dtype)
    down_w = (jax.random.normal(k3, (H, I), jnp.float32) * scale_i).astype(dtype)

    y = deepseek_v3_mlp_forward(x, gate_w, up_w, down_w)
    y = jax.block_until_ready(y)

    y_ref = jax.block_until_ready(reference_forward(x, gate_w, up_w, down_w))

    assert y.shape == (B, S, H)
    yf = y.astype(jnp.float32)
    assert bool(jnp.all(jnp.isfinite(yf)))
    assert jnp.allclose(yf, y_ref, rtol=2e-2, atol=2e-2), "mismatch vs reference"

    print("KERNEL_OK")
</pallas_src>

<mosaic_0001>
module attributes {stable_mosaic.version = 11 : i64} {
  func.func @_swiglu_mlp_kernel(%arg0: i32, %arg1: i32, %arg2: memref<16x256xbf16, #tpu.memory_space<vmem>>, %arg3: memref<256x256xbf16, #tpu.memory_space<vmem>>, %arg4: memref<256x256xbf16, #tpu.memory_space<vmem>>, %arg5: memref<256x256xbf16, #tpu.memory_space<vmem>>, %arg6: memref<16x256xbf16, #tpu.memory_space<vmem>>, %arg7: memref<16x256xf32, #tpu.memory_space<vmem>>) attributes {dimension_semantics = [#tpu.dimension_semantics<parallel>, #tpu.dimension_semantics<arbitrary>], iteration_bounds = array<i64: 1, 2>, scalar_prefetch = 0 : i64, scratch_operands = 1 : i64, tpu.core_type = #tpu.core_type<tc>, window_params = [{transform_indices = @transform_0, window_bounds = array<i64: 16, 256>}, {transform_indices = @transform_1, window_bounds = array<i64: 256, 256>}, {transform_indices = @transform_2, window_bounds = array<i64: 256, 256>}, {transform_indices = @transform_3, window_bounds = array<i64: 256, 256>}, {transform_indices = @transform_4, window_bounds = array<i64: 16, 256>}]} {
    %c0_i32 = arith.constant 0 : i32
    %0 = arith.cmpi eq, %arg1, %c0_i32 : i32
    %1 = arith.extui %0 : i1 to i32
    %c0_i32_0 = arith.constant 0 : i32
    %2 = arith.cmpi ne, %1, %c0_i32_0 : i32
    scf.if %2 {
      %cst_16 = arith.constant 0.000000e+00 : f32
      %24 = vector.broadcast %cst_16 : f32 to vector<16x256xf32>
      %c0_17 = arith.constant 0 : index
      %c0_18 = arith.constant 0 : index
      %25 = vector.load %arg7[%c0_17, %c0_18] : memref<16x256xf32, #tpu.memory_space<vmem>>, vector<16x256xf32>
      tpu.vector_store %arg7[%c0_17, %c0_18], %24 {strides = array<i32>} : memref<16x256xf32, #tpu.memory_space<vmem>>, vector<16x256xf32>,
    } else {
    }
    %c0 = arith.constant 0 : index
    %c0_1 = arith.constant 0 : index
    %3 = vector.load %arg2[%c0, %c0_1] : memref<16x256xbf16, #tpu.memory_space<vmem>>, vector<16x256xbf16>
    %c0_2 = arith.constant 0 : index
    %c0_3 = arith.constant 0 : index
    %4 = vector.load %arg3[%c0_2, %c0_3] : memref<256x256xbf16, #tpu.memory_space<vmem>>, vector<256x256xbf16>
    %cst = arith.constant dense<0.000000e+00> : vector<16x256xf32>
    %5 = tpu.matmul %3, %4, %cst {dimension_numbers = #tpu.dot_dimension_numbers<[1], [1], [0], [0], [0, 0, 1, 0], [], []>} : vector<16x256xbf16>, vector<256x256xbf16>, vector<16x256xf32> -> vector<16x256xf32>
    %c0_4 = arith.constant 0 : index
    %c0_5 = arith.constant 0 : index
    %6 = vector.load %arg4[%c0_4, %c0_5] : memref<256x256xbf16, #tpu.memory_space<vmem>>, vector<256x256xbf16>
    %cst_6 = arith.constant dense<0.000000e+00> : vector<16x256xf32>
    %7 = tpu.matmul %3, %6, %cst_6 {dimension_numbers = #tpu.dot_dimension_numbers<[1], [1], [0], [0], [0, 0, 1, 0], [], []>} : vector<16x256xbf16>, vector<256x256xbf16>, vector<16x256xf32> -> vector<16x256xf32>
    %8 = arith.negf %5 : vector<16x256xf32>
    %9 = math.exp %8 : vector<16x256xf32>
    %cst_7 = arith.constant 1.000000e+00 : f32
    %10 = vector.broadcast %cst_7 : f32 to vector<16x256xf32>
    %11 = arith.addf %10, %9 : vector<16x256xf32>
    %12 = arith.divf %10, %11 : vector<16x256xf32>
    %13 = arith.mulf %5, %12 : vector<16x256xf32>
    %14 = arith.mulf %13, %7 : vector<16x256xf32>
    %15 = arith.truncf %14 : vector<16x256xf32> to vector<16x256xbf16>
    %c0_8 = arith.constant 0 : index
    %c0_9 = arith.constant 0 : index
    %16 = vector.load %arg7[%c0_8, %c0_9] : memref<16x256xf32, #tpu.memory_space<vmem>>, vector<16x256xf32>
    %c0_10 = arith.constant 0 : index
    %c0_11 = arith.constant 0 : index
    %17 = vector.load %arg5[%c0_10, %c0_11] : memref<256x256xbf16, #tpu.memory_space<vmem>>, vector<256x256xbf16>
    %cst_12 = arith.constant dense<0.000000e+00> : vector<16x256xf32>
    %18 = tpu.matmul %15, %17, %cst_12 {dimension_numbers = #tpu.dot_dimension_numbers<[1], [0], [0], [1], [0, 0, 1, 1], [], []>} : vector<16x256xbf16>, vector<256x256xbf16>, vector<16x256xf32> -> vector<16x256xf32>
    %19 = arith.addf %16, %18 : vector<16x256xf32>
    %c0_13 = arith.constant 0 : index
    %c0_14 = arith.constant 0 : index
    %20 = vector.load %arg7[%c0_13, %c0_14] : memref<16x256xf32, #tpu.memory_space<vmem>>, vector<16x256xf32>
    tpu.vector_store %arg7[%c0_13, %c0_14], %19 {strides = array<i32>} : memref<16x256xf32, #tpu.memory_space<vmem>>, vector<16x256xf32>,
    %c1_i32 = arith.constant 1 : i32
    %21 = arith.cmpi eq, %arg1, %c1_i32 : i32
    %22 = arith.extui %21 : i1 to i32
    %c0_i32_15 = arith.constant 0 : i32
    %23 = arith.cmpi ne, %22, %c0_i32_15 : i32
    scf.if %23 {
      %c0_16 = arith.constant 0 : index
      %c0_17 = arith.constant 0 : index
      %24 = vector.load %arg7[%c0_16, %c0_17] : memref<16x256xf32, #tpu.memory_space<vmem>>, vector<16x256xf32>
      %25 = arith.truncf %24 : vector<16x256xf32> to vector<16x256xbf16>
      %c0_18 = arith.constant 0 : index
      %c0_19 = arith.constant 0 : index
      %26 = vector.load %arg6[%c0_18, %c0_19] : memref<16x256xbf16, #tpu.memory_space<vmem>>, vector<16x256xbf16>
      tpu.vector_store %arg6[%c0_18, %c0_19], %25 {strides = array<i32>} : memref<16x256xbf16, #tpu.memory_space<vmem>>, vector<16x256xbf16>,
    } else {
    }
    return
  }
  func.func @transform_0(%arg0: i32, %arg1: i32) -> (i32, i32) {
    %c0_i32 = arith.constant 0 : i32
    %c0_i32_0 = arith.constant 0 : i32
    return %arg0, %c0_i32 : i32, i32
  }
  func.func @transform_1(%arg0: i32, %arg1: i32) -> (i32, i32) {
    %c0_i32 = arith.constant 0 : i32
    %c0_i32_0 = arith.constant 0 : i32
    return %arg1, %c0_i32 : i32, i32
  }
  func.func @transform_2(%arg0: i32, %arg1: i32) -> (i32, i32) {
    %c0_i32 = arith.constant 0 : i32
    %c0_i32_0 = arith.constant 0 : i32
    return %arg1, %c0_i32 : i32, i32
  }
  func.func @transform_3(%arg0: i32, %arg1: i32) -> (i32, i32) {
    %c0_i32 = arith.constant 0 : i32
    %c0_i32_0 = arith.constant 0 : i32
    return %arg1, %c0_i32 : i32, i32
  }
  func.func @transform_4(%arg0: i32, %arg1: i32) -> (i32, i32) {
    %c0_i32 = arith.constant 0 : i32
    %c0_i32_0 = arith.constant 0 : i32
    return %arg0, %c0_i32 : i32, i32
  }
}

</mosaic_0001>

<llo_original>
// kernel: deepseek_v3_mlp_forward.1
$region0: #{deepseek_v3_mlp_forward.1}
  #allocation0 [shape = 'u32[]', space=smem, size = 0x4, offset = 0x4, fixed_abs, tag = 'smem constant byte address 0x4 - core index']
  #allocation1 [shape = 'u32[144,128]{1,0:T(1,128)}', space=vmem, size = 0x12000, scoped, tag = 'internal scratch']
  #allocation2 [shape = 'f32[16,256]{1,0:T(8,128)}', space=vmem, size = 0x4000, scoped, tag = 'scratch operand']
  %s0 = inlined_call_operand.hbm [shape: bf16[16,256], index: 0, kind: input, shape index: {}]
  %s1 = inlined_call_operand.hbm [shape: bf16[512,256], index: 1, kind: input, shape index: {}]
  %s2 = inlined_call_operand.hbm [shape: bf16[512,256], index: 2, kind: input, shape index: {}]
  %s3 = inlined_call_operand.hbm [shape: bf16[512,256], index: 3, kind: input, shape index: {}]
  %s4 = inlined_call_operand.hbm [shape: bf16[16,256], index: 4, kind: output, shape index: {}]
  %s5 = sld [smem:[#allocation0]]
  $region73: #{deepseek_v3_mlp_forward.1} parent=0
    _
  %s7 = ssub.s32 1, %s5
  %s8 = scalar_select 0, %s7, %s5
  $region1: #{deepseek_v3_mlp_forward.1} parent=0
    #allocation3 [shape = 'u8[8192]{0}', space=vmem, size = 0x2000, scoped, tag = 'input window, operand 0, single buffered']
    #allocation4 [shape = 's32[2]{0}', space=sflag, size = 0x8, scoped, tag = 'scoped memory for deepseek_v3_mlp_forward.1']
    #allocation5 [shape = 's32[2]{0}', space=sflag, size = 0x8, scoped, tag = 'scoped memory for deepseek_v3_mlp_forward.1']
    #allocation6 [shape = 'u8[262144]{0}', space=vmem, size = 0x40000, scoped, tag = 'input window, operand 1']
    #allocation7 [shape = 's32[2]{0}', space=sflag, size = 0x8, scoped, tag = 'scoped memory for deepseek_v3_mlp_forward.1']
    #allocation8 [shape = 'u8[262144]{0}', space=vmem, size = 0x40000, scoped, tag = 'input window, operand 2']
    #allocation9 [shape = 'u8[262144]{0}', space=vmem, size = 0x40000, scoped, tag = 'input window, operand 3']
    #allocation10 [shape = 's32[2]{0}', space=sflag, size = 0x8, scoped, tag = 'scoped memory for deepseek_v3_mlp_forward.1']
    #allocation11 [shape = 'u8[8192]{0}', space=vmem, size = 0x2000, scoped, tag = 'output window, operand 0, single buffered']
    %9 = vsyncpa [#allocation4], 0
    %10 = vsyncpa [#allocation7], 0
    %s11 = scalar_lea.sflag [#allocation7], 1
    %12 = vsyncpa %s11, 0
    %13 = vsyncpa [#allocation10], 0
    %s14 = scalar_lea.sflag [#allocation10], 1
    %15 = vsyncpa %s14, 0
    %16 = vsyncpa [#allocation5], 0
    loop: start=0, step=1, limit=4
    $region2: #{deepseek_v3_mlp_forward.1} parent=1 // loop_pre_header
      _
    $region3: #{deepseek_v3_mlp_forward.1} parent=1 // loop_header
      %s18 = sphi 0, %s22
      %p19 = scmp.ge.s32.totalorder %s18, 4
      %s25 = sphi 0, %s37
      %s26 = sphi 0, %s33
      %s27 = sphi 0, %s25
      %s28 = sphi 0, %s26
      %s29 = sphi 0, %s27
      %s30 = sphi 0, %s28
      %s40 = sphi 0, %s42
      %s43 = sphi 0, %s40
      %s44 = sphi 0, %s43
      %s60 = sphi 0, %s44
      %s66 = sphi 0, %s68
      %s69 = sphi 0, %s66
      %s70 = sphi 0, %s69
      %s86 = sphi 0, %s70
      %s92 = sphi 0, %s94
      %s95 = sphi 0, %s92
      %s96 = sphi 0, %s95
      %s112 = sphi 0, %s96
      %s118 = sphi 0, %s120
      %s121 = sphi 0, %s118
      %s122 = sphi 0, %s121
      %s138 = sphi 0, %s122
      %s144 = sphi 0, %s146
      %s147 = sphi 0, %s144
      %s148 = sphi 0, %s147
      %s164 = sphi 0, %s148
    $region4: #{deepseek_v3_mlp_forward.1} parent=1 // loop_header_branch
      %21 = sbr.rel (%p19) target = $region8
    $region5: #{deepseek_v3_mlp_forward.1} parent=1 // loop_body
      %s23 = ssub.s32 %s18, 1
      %s24 = ssub.s32 %s18, 2
      %s31 = sadd.s32 1, %s26
      %p32 = scmp.ge.s32.totalorder %s31, 2
      %s33 = scalar_select %p32, 0, %s31
      %s34 = sadd.s32 1, %s25
      %s35 = scalar_select %p32, %s34, %s25
      %p36 = scmp.ge.s32.totalorder %s35, 1
      %s37 = scalar_select %p36, 0, %s35
      %s38 = ssub.s32 %s25, %s37
      %p39 = scmp.eq.s32.totalorder %s38, 0
      %s41 = sadd.s32 %s40, 1
      %s42 = scalar_select %p39, %s40, %s41
      %p45 = pneg %p39
      %p46 = scmp.eq.s32.totalorder %s18, 1
      %p47 = por %p45, %p46
      %p48 = scmp.ne.s32.totalorder %s40, %s43
      %p49 = scmp.eq.s32.totalorder %s18, 0
      %p50 = por %p48, %p49
      %p51 = scmp.ne.s32.totalorder %s40, %s43
      %p52 = scmp.eq.s32.totalorder %s23, 1
      %p53 = por %p51, %p52
      %p54 = scmp.ne.s32.totalorder %s43, %s44
      %p55 = scmp.eq.s32.totalorder %s23, 0
      %p56 = por %p54, %p55
      %p57 = scmp.ne.s32.totalorder %s43, %s44
      %p58 = scmp.eq.s32.totalorder %s24, 1
      %p59 = por %p57, %p58
      %p61 = scmp.ne.s32.totalorder %s44, %s60
      %p62 = scmp.eq.s32.totalorder %s24, 0
      %p63 = por %p61, %p62
      %s64 = ssub.s32 %s26, %s33
      %p65 = scmp.eq.s32.totalorder %s64, 0
      %s67 = sadd.s32 %s66, 1
      %s68 = scalar_select %p65, %s66, %s67
      %p71 = pneg %p65
      %p72 = scmp.eq.s32.totalorder %s18, 1
      %p73 = por %p71, %p72
      %p74 = scmp.ne.s32.totalorder %s66, %s69
      %p75 = scmp.eq.s32.totalorder %s18, 0
      %p76 = por %p74, %p75
      %p77 = scmp.ne.s32.totalorder %s66, %s69
      %p78 = scmp.eq.s32.totalorder %s23, 1
      %p79 = por %p77, %p78
      %p80 = scmp.ne.s32.totalorder %s69, %s70
      %p81 = scmp.eq.s32.totalorder %s23, 0
      %p82 = por %p80, %p81
      %p83 = scmp.ne.s32.totalorder %s69, %s70
      %p84 = scmp.eq.s32.totalorder %s24, 1
      %p85 = por %p83, %p84
      %p87 = scmp.ne.s32.totalorder %s70, %s86
      %p88 = scmp.eq.s32.totalorder %s24, 0
      %p89 = por %p87, %p88
      %s90 = ssub.s32 %s26, %s33
      %p91 = scmp.eq.s32.totalorder %s90, 0
      %s93 = sadd.s32 %s92, 1
      %s94 = scalar_select %p91, %s92, %s93
      %p97 = pneg %p91
      %p98 = scmp.eq.s32.totalorder %s18, 1
      %p99 = por %p97, %p98
      %p100 = scmp.ne.s32.totalorder %s92, %s95
      %p101 = scmp.eq.s32.totalorder %s18, 0
      %p102 = por %p100, %p101
      %p103 = scmp.ne.s32.totalorder %s92, %s95
      %p104 = scmp.eq.s32.totalorder %s23, 1
      %p105 = por %p103, %p104
      %p106 = scmp.ne.s32.totalorder %s95, %s96
      %p107 = scmp.eq.s32.totalorder %s23, 0
      %p108 = por %p106, %p107
      %p109 = scmp.ne.s32.totalorder %s95, %s96
      %p110 = scmp.eq.s32.totalorder %s24, 1
      %p111 = por %p109, %p110
      %p113 = scmp.ne.s32.totalorder %s96, %s112
      %p114 = scmp.eq.s32.totalorder %s24, 0
      %p115 = por %p113, %p114
      %s116 = ssub.s32 %s26, %s33
      %p117 = scmp.eq.s32.totalorder %s116, 0
      %s119 = sadd.s32 %s118, 1
      %s120 = scalar_select %p117, %s118, %s119
      %p123 = pneg %p117
      %p124 = scmp.eq.s32.totalorder %s18, 1
      %p125 = por %p123, %p124
      %p126 = scmp.ne.s32.totalorder %s118, %s121
      %p127 = scmp.eq.s32.totalorder %s18, 0
      %p128 = por %p126, %p127
      %p129 = scmp.ne.s32.totalorder %s118, %s121
      %p130 = scmp.eq.s32.totalorder %s23, 1
      %p131 = por %p129, %p130
      %p132 = scmp.ne.s32.totalorder %s121, %s122
      %p133 = scmp.eq.s32.totalorder %s23, 0
      %p134 = por %p132, %p133
      %p135 = scmp.ne.s32.totalorder %s121, %s122
      %p136 = scmp.eq.s32.totalorder %s24, 1
      %p137 = por %p135, %p136
      %p139 = scmp.ne.s32.totalorder %s122, %s138
      %p140 = scmp.eq.s32.totalorder %s24, 0
      %p141 = por %p139, %p140
      %s142 = ssub.s32 %s25, %s37
      %p143 = scmp.eq.s32.totalorder %s142, 0
      %s145 = sadd.s32 %s144, 1
      %s146 = scalar_select %p143, %s144, %s145
      %p149 = pneg %p143
      %p150 = scmp.eq.s32.totalorder %s18, 1
      %p151 = por %p149, %p150
      %p152 = scmp.ne.s32.totalorder %s144, %s147
      %p153 = scmp.eq.s32.totalorder %s18, 0
      %p154 = por %p152, %p153
      %p155 = scmp.ne.s32.totalorder %s144, %s147
      %p156 = scmp.eq.s32.totalorder %s23, 1
      %p157 = por %p155, %p156
      %p158 = scmp.ne.s32.totalorder %s147, %s148
      %p159 = scmp.eq.s32.totalorder %s23, 0
      %p160 = por %p158, %p159
      %p161 = scmp.ne.s32.totalorder %s147, %s148
      %p162 = scmp.eq.s32.totalorder %s24, 1
      %p163 = por %p161, %p162
      %p165 = scmp.ne.s32.totalorder %s148, %s164
      %p166 = scmp.eq.s32.totalorder %s24, 0
      %p167 = por %p165, %p166
      %p168 = scmp.le.s32.totalorder 1, %s18
      %p169 = scmp.lt.s32.totalorder %s18, 3
      %p170 = pnand %p168, %p169
      %p171 = pneg %p170
      // Predicated region
      $region9: #{deepseek_v3_mlp_forward.1} parent=5 // pred_check
        _
      $region10: #{deepseek_v3_mlp_forward.1} parent=5 // pred_check_branch
        %173 = sbr.rel (%p170) target = $region12
      $region11: #{deepseek_v3_mlp_forward.1} parent=5 // pred_region
        %s174 = ssub.s32 %s18, 1
        // Predicated region
        $region13: #{deepseek_v3_mlp_forward.1} parent=11 // pred_check
          %p175 = pneg %p56
        $region14: #{deepseek_v3_mlp_forward.1} parent=11 // pred_check_branch
          %177 = sbr.rel (%p175) target = $region16
        $region15: #{deepseek_v3_mlp_forward.1} parent=11 // pred_region
          %s178 = smul.u32 2, %s27
          %s180 = ssub.s32 256, 256
          %181 = vsyncadd [#allocation4], %s180
          %s182 = smul.addr %s178, 2
          %s183 = smul.addr %s182, 64
          %s184 = scalar_lea.hbm %s0, %s183
          %s185 = sshll.u32 [#allocation3], 4
          %s186 = int_to_ptr.vmem [resolvable:$true] %s185
          %191 = dma.hbm_to_vmem [thread:$0]  %s184, 256, %s186, [#allocation4], 128, 128, 8
        $region16: #{deepseek_v3_mlp_forward.1} parent=11 // pred_fallthru
          _
      $region12: #{deepseek_v3_mlp_forward.1} parent=5 // pred_fallthru
        _
      %p192 = scmp.lt.s32.totalorder %s18, 2
      // Predicated region
      $region17: #{deepseek_v3_mlp_forward.1} parent=5 // pred_check
        %p193 = pneg %p192
      $region18: #{deepseek_v3_mlp_forward.1} parent=5 // pred_check_branch
        %195 = sbr.rel (%p193) target = $region20
      $region19: #{deepseek_v3_mlp_forward.1} parent=5 // pred_region
        // Predicated region
        $region21: #{deepseek_v3_mlp_forward.1} parent=19 // pred_check
          %p196 = pneg %p76
        $region22: #{deepseek_v3_mlp_forward.1} parent=19 // pred_check_branch
          %198 = sbr.rel (%p196) target = $region24
        $region23: #{deepseek_v3_mlp_forward.1} parent=19 // pred_region
          %s199 = sand.u32 %s18, 1
          %s200 = scalar_lea.sflag [#allocation7], %s199
          %s201 = sand.u32 %s66, 1
          %s202 = smul.addr %s201, 256
          %s203 = scalar_lea.vmem [#allocation6], %s202
          %s204 = smul.u32 32, %s26
          %s206 = ssub.s32 4096, 4096
          %207 = vsyncadd %s200, %s206
          %s208 = smul.addr %s204, 2
          %s209 = smul.addr %s208, 64
          %s210 = scalar_lea.hbm %s1, %s209
          %s211 = sshll.u32 %s203, 4
          %s212 = int_to_ptr.vmem [resolvable:$true] %s211
          %217 = dma.hbm_to_vmem [thread:$0]  %s210, 4096, %s212, %s200, 128, 128, 8
        $region24: #{deepseek_v3_mlp_forward.1} parent=19 // pred_fallthru
          _
        // Predicated region
        $region25: #{deepseek_v3_mlp_forward.1} parent=19 // pred_check
          %p218 = pneg %p102
        $region26: #{deepseek_v3_mlp_forward.1} parent=19 // pred_check_branch
          %220 = sbr.rel (%p218) target = $region28
        $region27: #{deepseek_v3_mlp_forward.1} parent=19 // pred_region
          %s221 = sand.u32 %s18, 1
          %s222 = scalar_lea.sflag [#allocation7], %s221
          %s223 = sand.u32 %s92, 1
          %s224 = smul.addr %s223, 256
          %s225 = scalar_lea.vmem [#allocation8], %s224
          %s226 = smul.u32 32, %s26
          %s228 = ssub.s32 4096, 4096
          %229 = vsyncadd %s222, %s228
          %s230 = smul.addr %s226, 2
          %s231 = smul.addr %s230, 64
          %s232 = scalar_lea.hbm %s2, %s231
          %s233 = sshll.u32 %s225, 4
          %s234 = int_to_ptr.vmem [resolvable:$true] %s233
          %239 = dma.hbm_to_vmem [thread:$0]  %s232, 4096, %s234, %s222, 128, 128, 8
        $region28: #{deepseek_v3_mlp_forward.1} parent=19 // pred_fallthru
          _
        // Predicated region
        $region29: #{deepseek_v3_mlp_forward.1} parent=19 // pred_check
          %p240 = pneg %p128
        $region30: #{deepseek_v3_mlp_forward.1} parent=19 // pred_check_branch
          %242 = sbr.rel (%p240) target = $region32
        $region31: #{deepseek_v3_mlp_forward.1} parent=19 // pred_region
          %s243 = sand.u32 %s118, 1
          %s244 = scalar_lea.sflag [#allocation10], %s243
          %s245 = sand.u32 %s118, 1
          %s246 = smul.addr %s245, 256
          %s247 = scalar_lea.vmem [#allocation9], %s246
          %s248 = smul.u32 32, %s26
          %s250 = ssub.s32 4096, 4096
          %251 = vsyncadd %s244, %s250
          %s252 = smul.addr %s248, 2
          %s253 = smul.addr %s252, 64
          %s254 = scalar_lea.hbm %s3, %s253
          %s255 = sshll.u32 %s247, 4
          %s256 = int_to_ptr.vmem [resolvable:$true] %s255
          %261 = dma.hbm_to_vmem [thread:$0]  %s254, 4096, %s256, %s244, 128, 128, 8
        $region32: #{deepseek_v3_mlp_forward.1} parent=19 // pred_fallthru
          _
      $region20: #{deepseek_v3_mlp_forward.1} parent=5 // pred_fallthru
        _
      %p262 = scmp.le.s32.totalorder 1, %s18
      %p263 = scmp.lt.s32.totalorder %s18, 3
      %p264 = pnand %p262, %p263
      %p265 = pneg %p264
      // Predicated region
      $region33: #{deepseek_v3_mlp_forward.1} parent=5 // pred_check
        _
      $region34: #{deepseek_v3_mlp_forward.1} parent=5 // pred_check_branch
        %267 = sbr.rel (%p264) target = $region36
      $region35: #{deepseek_v3_mlp_forward.1} parent=5 // pred_region
        %s268 = ssub.s32 %s18, 1
        // Predicated region
        $region37: #{deepseek_v3_mlp_forward.1} parent=35 // pred_check
          %p269 = pneg %p56
        $region38: #{deepseek_v3_mlp_forward.1} parent=35 // pred_check_branch
          %271 = sbr.rel (%p269) target = $region40
        $region39: #{deepseek_v3_mlp_forward.1} parent=35 // pred_region
          %272 = dma.done [#allocation4], 256
        $region40: #{deepseek_v3_mlp_forward.1} parent=35 // pred_fallthru
          _
        %s273 = sand.u32 %s23, 1
        %s274 = scalar_lea.sflag [#allocation7], %s273
        %s275 = sand.u32 %s69, 1
        %s276 = smul.addr %s275, 256
        %s277 = scalar_lea.vmem [#allocation6], %s276
        // Predicated region
        $region41: #{deepseek_v3_mlp_forward.1} parent=35 // pred_check
          %p278 = pneg %p82
        $region42: #{deepseek_v3_mlp_forward.1} parent=35 // pred_check_branch
          %280 = sbr.rel (%p278) target = $region44
        $region43: #{deepseek_v3_mlp_forward.1} parent=35 // pred_region
          %281 = dma.done %s274, 4096
        $region44: #{deepseek_v3_mlp_forward.1} parent=35 // pred_fallthru
          _
        %s282 = sand.u32 %s23, 1
        %s283 = scalar_lea.sflag [#allocation7], %s282
        %s284 = sand.u32 %s95, 1
        %s285 = smul.addr %s284, 256
        %s286 = scalar_lea.vmem [#allocation8], %s285
        // Predicated region
        $region45: #{deepseek_v3_mlp_forward.1} parent=35 // pred_check
          %p287 = pneg %p108
        $region46: #{deepseek_v3_mlp_forward.1} parent=35 // pred_check_branch
          %289 = sbr.rel (%p287) target = $region48
        $region47: #{deepseek_v3_mlp_forward.1} parent=35 // pred_region
          %290 = dma.done %s283, 4096
        $region48: #{deepseek_v3_mlp_forward.1} parent=35 // pred_fallthru
          _
        %s291 = sand.u32 %s121, 1
        %s292 = scalar_lea.sflag [#allocation10], %s291
        %s293 = sand.u32 %s121, 1
        %s294 = smul.addr %s293, 256
        %s295 = scalar_lea.vmem [#allocation9], %s294
        // Predicated region
        $region49: #{deepseek_v3_mlp_forward.1} parent=35 // pred_check
          %p296 = pneg %p134
        $region50: #{deepseek_v3_mlp_forward.1} parent=35 // pred_check_branch
          %298 = sbr.rel (%p296) target = $region52
        $region51: #{deepseek_v3_mlp_forward.1} parent=35 // pred_region
          %299 = dma.done %s292, 4096
        $region52: #{deepseek_v3_mlp_forward.1} parent=35 // pred_fallthru
          _
        %p300 = pneg %p56
        %p301 = pneg %p53
        %s302 = sand.u32 %s23, 1
        %s303 = scalar_lea.sflag [#allocation7], %s302
        %s304 = sand.u32 %s69, 1
        %s305 = smul.addr %s304, 256
        %s306 = scalar_lea.vmem [#allocation6], %s305
        %p307 = pneg %p82
        %p308 = pneg %p79
        %s309 = sand.u32 %s23, 1
        %s310 = scalar_lea.sflag [#allocation7], %s309
        %s311 = sand.u32 %s95, 1
        %s312 = smul.addr %s311, 256
        %s313 = scalar_lea.vmem [#allocation8], %s312
        %p314 = pneg %p108
        %p315 = pneg %p105
        %s316 = sand.u32 %s121, 1
        %s317 = scalar_lea.sflag [#allocation10], %s316
        %s318 = sand.u32 %s121, 1
        %s319 = smul.addr %s318, 256
        %s320 = scalar_lea.vmem [#allocation9], %s319
        %p321 = pneg %p134
        %p322 = pneg %p131
        %p323 = pneg %p160
        %p324 = pneg %p157
        %s325 = smul.u32 2, %s27
        %s326 = smul.u32 32, %s28
        %s327 = smul.u32 32, %s28
        %s328 = smul.u32 32, %s28
        %s329 = smul.u32 2, %s27
        %p330 = scmp.eq.s32.totalorder %s28, 0
        // Predicated region
        $region53: #{deepseek_v3_mlp_forward.1} parent=35 // pred_check
          %p331 = pneg %p330
        $region54: #{deepseek_v3_mlp_forward.1} parent=35 // pred_check_branch
          %333 = sbr.rel (%p331) target = $region56
        $region55: #{deepseek_v3_mlp_forward.1} parent=35 // pred_region
          %334 = vst [vmem:[#allocation2] sm:$0xff] 0.0
          %335 = vst [vmem:[#allocation2 + $0x8] sm:$0xff] 0.0
          %336 = vst [vmem:[#allocation2 + $0x10] sm:$0xff] 0.0
          %337 = vst [vmem:[#allocation2 + $0x18] sm:$0xff] 0.0
        $region56: #{deepseek_v3_mlp_forward.1} parent=35 // pred_fallthru
          _
        %v338 = vld [vmem:[#allocation3] sm:$0xff]
        %v339 = vld [vmem:[#allocation3 + $0x8] sm:$0xff]
        %v340 = vld [vmem:[%s277] sm:$0xff]
        %v341 = vld [vmem:[%s277 + $0x8] sm:$0xff]
        %v342 = vld [vmem:[%s277 + $0x10] sm:$0xff]
        %v343 = vld [vmem:[%s277 + $0x18] sm:$0xff]
        %v344 = vld [vmem:[%s277 + $0x20] sm:$0xff]
        %v345 = vld [vmem:[%s277 + $0x28] sm:$0xff]
        %v346 = vld [vmem:[%s277 + $0x30] sm:$0xff]
        %v347 = vld [vmem:[%s277 + $0x38] sm:$0xff]
        %v348 = vld [vmem:[%s277 + $0x40] sm:$0xff]
        %v349 = vld [vmem:[%s277 + $0x48] sm:$0xff]
        %v350 = vld [vmem:[%s277 + $0x50] sm:$0xff]
        %v351 = vld [vmem:[%s277 + $0x58] sm:$0xff]
        %v352 = vld [vmem:[%s277 + $0x60] sm:$0xff]
        %v353 = vld [vmem:[%s277 + $0x68] sm:$0xff]
        %v354 = vld [vmem:[%s277 + $0x70] sm:$0xff]
        %v355 = vld [vmem:[%s277 + $0x78] sm:$0xff]
        %v356 = vld [vmem:[%s277 + $0x80] sm:$0xff]
        %v357 = vld [vmem:[%s277 + $0x88] sm:$0xff]
        %v358 = vld [vmem:[%s277 + $0x90] sm:$0xff]
        %v359 = vld [vmem:[%s277 + $0x98] sm:$0xff]
        %v360 = vld [vmem:[%s277 + $0xa0] sm:$0xff]
        %v361 = vld [vmem:[%s277 + $0xa8] sm:$0xff]
        %v362 = vld [vmem:[%s277 + $0xb0] sm:$0xff]
        %v363 = vld [vmem:[%s277 + $0xb8] sm:$0xff]
        %v364 = vld [vmem:[%s277 + $0xc0] sm:$0xff]
        %v365 = vld [vmem:[%s277 + $0xc8] sm:$0xff]
        %v366 = vld [vmem:[%s277 + $0xd0] sm:$0xff]
        %v367 = vld [vmem:[%s277 + $0xd8] sm:$0xff]
        %v368 = vld [vmem:[%s277 + $0xe0] sm:$0xff]
        %v369 = vld [vmem:[%s277 + $0xe8] sm:$0xff]
        %v370 = vld [vmem:[%s277 + $0xf0] sm:$0xff]
        %v371 = vld [vmem:[%s277 + $0xf8] sm:$0xff]
        %v374 = vunpack.c.l.b16 %v338
        %v375 = vunpack.c.h.b16 %v338
        %v376 = vunpack.c.l.b16 %v339
        %v377 = vunpack.c.h.b16 %v339
        %v378 = vpack.c.b16 %v376, %v374
        %v379 = vpack.c.b16 %v377, %v375
        %v414 = vunpack.c.l.b16 %v340
        %v415 = vunpack.c.h.b16 %v340
        %v416 = vunpack.c.l.b16 %v341
        %v417 = vunpack.c.h.b16 %v341
        %v418 = vunpack.c.l.b16 %v342
        %v419 = vunpack.c.h.b16 %v342
        %v420 = vunpack.c.l.b16 %v343
        %v421 = vunpack.c.h.b16 %v343
        %v422 = vunpack.c.l.b16 %v344
        %v423 = vunpack.c.h.b16 %v344
        %v424 = vunpack.c.l.b16 %v345
        %v425 = vunpack.c.h.b16 %v345
        %v426 = vunpack.c.l.b16 %v346
        %v427 = vunpack.c.h.b16 %v346
        %v428 = vunpack.c.l.b16 %v347
        %v429 = vunpack.c.h.b16 %v347
        %v430 = vunpack.c.l.b16 %v348
        %v431 = vunpack.c.h.b16 %v348
        %v432 = vunpack.c.l.b16 %v349
        %v433 = vunpack.c.h.b16 %v349
        %v434 = vunpack.c.l.b16 %v350
        %v435 = vunpack.c.h.b16 %v350
        %v436 = vunpack.c.l.b16 %v351
        %v437 = vunpack.c.h.b16 %v351
        %v438 = vunpack.c.l.b16 %v352
        %v439 = vunpack.c.h.b16 %v352
        %v440 = vunpack.c.l.b16 %v353
        %v441 = vunpack.c.h.b16 %v353
        %v442 = vunpack.c.l.b16 %v354
        %v443 = vunpack.c.h.b16 %v354
        %v444 = vunpack.c.l.b16 %v355
        %v445 = vunpack.c.h.b16 %v355
        %v446 = vunpack.c.l.b16 %v356
        %v447 = vunpack.c.h.b16 %v356
        %v448 = vunpack.c.l.b16 %v357
        %v449 = vunpack.c.h.b16 %v357
        %v450 = vunpack.c.l.b16 %v358
        %v451 = vunpack.c.h.b16 %v358
        %v452 = vunpack.c.l.b16 %v359
        %v453 = vunpack.c.h.b16 %v359
        %v454 = vunpack.c.l.b16 %v360
        %v455 = vunpack.c.h.b16 %v360
        %v456 = vunpack.c.l.b16 %v361
        %v457 = vunpack.c.h.b16 %v361
        %v458 = vunpack.c.l.b16 %v362
        %v459 = vunpack.c.h.b16 %v362
        %v460 = vunpack.c.l.b16 %v363
        %v461 = vunpack.c.h.b16 %v363
        %v462 = vunpack.c.l.b16 %v364
        %v463 = vunpack.c.h.b16 %v364
        %v464 = vunpack.c.l.b16 %v365
        %v465 = vunpack.c.h.b16 %v365
        %v466 = vunpack.c.l.b16 %v366
        %v467 = vunpack.c.h.b16 %v366
        %v468 = vunpack.c.l.b16 %v367
        %v469 = vunpack.c.h.b16 %v367
        %v470 = vunpack.c.l.b16 %v368
        %v471 = vunpack.c.h.b16 %v368
        %v472 = vunpack.c.l.b16 %v369
        %v473 = vunpack.c.h.b16 %v369
        %v474 = vunpack.c.l.b16 %v370
        %v475 = vunpack.c.h.b16 %v370
        %v476 = vunpack.c.l.b16 %v371
        %v477 = vunpack.c.h.b16 %v371
        %v478 = vpack.c.b16 %v416, %v414
        %v479 = vpack.c.b16 %v417, %v415
        %v480 = vpack.c.b16 %v420, %v418
        %v481 = vpack.c.b16 %v421, %v419
        %v482 = vpack.c.b16 %v424, %v422
        %v483 = vpack.c.b16 %v425, %v423
        %v484 = vpack.c.b16 %v428, %v426
        %v485 = vpack.c.b16 %v429, %v427
        %v486 = vpack.c.b16 %v432, %v430
        %v487 = vpack.c.b16 %v433, %v431
        %v488 = vpack.c.b16 %v436, %v434
        %v489 = vpack.c.b16 %v437, %v435
        %v490 = vpack.c.b16 %v440, %v438
        %v491 = vpack.c.b16 %v441, %v439
        %v492 = vpack.c.b16 %v444, %v442
        %v493 = vpack.c.b16 %v445, %v443
        %v494 = vpack.c.b16 %v448, %v446
        %v495 = vpack.c.b16 %v449, %v447
        %v496 = vpack.c.b16 %v452, %v450
        %v497 = vpack.c.b16 %v453, %v451
        %v498 = vpack.c.b16 %v456, %v454
        %v499 = vpack.c.b16 %v457, %v455
        %v500 = vpack.c.b16 %v460, %v458
        %v501 = vpack.c.b16 %v461, %v459
        %v502 = vpack.c.b16 %v464, %v462
        %v503 = vpack.c.b16 %v465, %v463
        %v504 = vpack.c.b16 %v468, %v466
        %v505 = vpack.c.b16 %v469, %v467
        %v506 = vpack.c.b16 %v472, %v470
        %v507 = vpack.c.b16 %v473, %v471
        %v508 = vpack.c.b16 %v476, %v474
        %v509 = vpack.c.b16 %v477, %v475
        %542 = vmatprep.subr.bf16.mxu0 %v479
        %543 = vmatpush1.bf16.xpose.msra.mxu0 %v478
        %544 = vmatprep.subr.bf16.mxu0 %v481
        %545 = vmatpush1.bf16.xpose.msra.mxu0 %v480
        %546 = vmatprep.subr.bf16.mxu0 %v483
        %547 = vmatpush1.bf16.xpose.msra.mxu0 %v482
        %548 = vmatprep.subr.bf16.mxu0 %v485
        %549 = vmatpush1.bf16.xpose.msra.mxu0 %v484
        %550 = vmatprep.subr.bf16.mxu0 %v487
        %551 = vmatpush1.bf16.xpose.msra.mxu0 %v486
        %552 = vmatprep.subr.bf16.mxu0 %v489
        %553 = vmatpush1.bf16.xpose.msra.mxu0 %v488
        %554 = vmatprep.subr.bf16.mxu0 %v491
        %555 = vmatpush1.bf16.xpose.msra.mxu0 %v490
        %556 = vmatprep.subr.bf16.mxu0 %v493
        %557 = vmatpush1.bf16.xpose.msra.mxu0 %v492
        %558 = vmatprep.subr.bf16.mxu0 %v495
        %559 = vmatpush1.bf16.xpose.msra.mxu0 %v494
        %560 = vmatprep.subr.bf16.mxu0 %v497
        %561 = vmatpush1.bf16.xpose.msra.mxu0 %v496
        %562 = vmatprep.subr.bf16.mxu0 %v499
        %563 = vmatpush1.bf16.xpose.msra.mxu0 %v498
        %564 = vmatprep.subr.bf16.mxu0 %v501
        %565 = vmatpush1.bf16.xpose.msra.mxu0 %v500
        %566 = vmatprep.subr.bf16.mxu0 %v503
        %567 = vmatpush1.bf16.xpose.msra.mxu0 %v502
        %568 = vmatprep.subr.bf16.mxu0 %v505
        %569 = vmatpush1.bf16.xpose.msra.mxu0 %v504
        %570 = vmatprep.subr.bf16.mxu0 %v507
        %571 = vmatpush1.bf16.xpose.msra.mxu0 %v506
        %572 = vmatprep.subr.bf16.mxu0 %v509
        %573 = vmatpush1.bf16.xpose.msra.mxu0 %v508
        %574 = vmatprep.mubr.bf16.mxu0 %v379
        %575 = vmatmul.mubr.bf16.gmra.mrb[0].mxu0 %v378
        %v576 = vpop.f32.mrb[0].mxu0
        %v577 = vadd.f32 0.0, %v576
        %v578 = vpop.f32.mrb[0].mxu0
        %v579 = vadd.f32 0.0, %v578
        %v580 = vpop.f32.mrb[0].mxu0
        %v581 = vadd.f32 0.0, %v580
        %v582 = vpop.f32.mrb[0].mxu0
        %v583 = vadd.f32 0.0, %v582
        %584 = vdwg.mxu0
        %v585 = vld [vmem:[%s286] sm:$0xff]
        %v586 = vld [vmem:[%s286 + $0x8] sm:$0xff]
        %v587 = vld [vmem:[%s286 + $0x10] sm:$0xff]
        %v588 = vld [vmem:[%s286 + $0x18] sm:$0xff]
        %v589 = vld [vmem:[%s286 + $0x20] sm:$0xff]
        %v590 = vld [vmem:[%s286 + $0x28] sm:$0xff]
        %v591 = vld [vmem:[%s286 + $0x30] sm:$0xff]
        %v592 = vld [vmem:[%s286 + $0x38] sm:$0xff]
        %v593 = vld [vmem:[%s286 + $0x40] sm:$0xff]
        %v594 = vld [vmem:[%s286 + $0x48] sm:$0xff]
        %v595 = vld [vmem:[%s286 + $0x50] sm:$0xff]
        %v596 = vld [vmem:[%s286 + $0x58] sm:$0xff]
        %v597 = vld [vmem:[%s286 + $0x60] sm:$0xff]
        %v598 = vld [vmem:[%s286 + $0x68] sm:$0xff]
        %v599 = vld [vmem:[%s286 + $0x70] sm:$0xff]
        %v600 = vld [vmem:[%s286 + $0x78] sm:$0xff]
        %v601 = vld [vmem:[%s286 + $0x80] sm:$0xff]
        %v602 = vld [vmem:[%s286 + $0x88] sm:$0xff]
        %v603 = vld [vmem:[%s286 + $0x90] sm:$0xff]
        %v604 = vld [vmem:[%s286 + $0x98] sm:$0xff]
        %v605 = vld [vmem:[%s286 + $0xa0] sm:$0xff]
        %v606 = vld [vmem:[%s286 + $0xa8] sm:$0xff]
        %v607 = vld [vmem:[%s286 + $0xb0] sm:$0xff]
        %v608 = vld [vmem:[%s286 + $0xb8] sm:$0xff]
        %v609 = vld [vmem:[%s286 + $0xc0] sm:$0xff]
        %v610 = vld [vmem:[%s286 + $0xc8] sm:$0xff]
        %v611 = vld [vmem:[%s286 + $0xd0] sm:$0xff]
        %v612 = vld [vmem:[%s286 + $0xd8] sm:$0xff]
        %v613 = vld [vmem:[%s286 + $0xe0] sm:$0xff]
        %v614 = vld [vmem:[%s286 + $0xe8] sm:$0xff]
        %v615 = vld [vmem:[%s286 + $0xf0] sm:$0xff]
        %v616 = vld [vmem:[%s286 + $0xf8] sm:$0xff]
        %v649 = vunpack.c.l.b16 %v585
        %v650 = vunpack.c.h.b16 %v585
        %v651 = vunpack.c.l.b16 %v586
        %v652 = vunpack.c.h.b16 %v586
        %v653 = vunpack.c.l.b16 %v587
        %v654 = vunpack.c.h.b16 %v587
        %v655 = vunpack.c.l.b16 %v588
        %v656 = vunpack.c.h.b16 %v588
        %v657 = vunpack.c.l.b16 %v589
        %v658 = vunpack.c.h.b16 %v589
        %v659 = vunpack.c.l.b16 %v590
        %v660 = vunpack.c.h.b16 %v590
        %v661 = vunpack.c.l.b16 %v591
        %v662 = vunpack.c.h.b16 %v591
        %v663 = vunpack.c.l.b16 %v592
        %v664 = vunpack.c.h.b16 %v592
        %v665 = vunpack.c.l.b16 %v593
        %v666 = vunpack.c.h.b16 %v593
        %v667 = vunpack.c.l.b16 %v594
        %v668 = vunpack.c.h.b16 %v594
        %v669 = vunpack.c.l.b16 %v595
        %v670 = vunpack.c.h.b16 %v595
        %v671 = vunpack.c.l.b16 %v596
        %v672 = vunpack.c.h.b16 %v596
        %v673 = vunpack.c.l.b16 %v597
        %v674 = vunpack.c.h.b16 %v597
        %v675 = vunpack.c.l.b16 %v598
        %v676 = vunpack.c.h.b16 %v598
        %v677 = vunpack.c.l.b16 %v599
        %v678 = vunpack.c.h.b16 %v599
        %v679 = vunpack.c.l.b16 %v600
        %v680 = vunpack.c.h.b16 %v600
        %v681 = vunpack.c.l.b16 %v601
        %v682 = vunpack.c.h.b16 %v601
        %v683 = vunpack.c.l.b16 %v602
        %v684 = vunpack.c.h.b16 %v602
        %v685 = vunpack.c.l.b16 %v603
        %v686 = vunpack.c.h.b16 %v603
        %v687 = vunpack.c.l.b16 %v604
        %v688 = vunpack.c.h.b16 %v604
        %v689 = vunpack.c.l.b16 %v605
        %v690 = vunpack.c.h.b16 %v605
        %v691 = vunpack.c.l.b16 %v606
        %v692 = vunpack.c.h.b16 %v606
        %v693 = vunpack.c.l.b16 %v607
        %v694 = vunpack.c.h.b16 %v607
        %v695 = vunpack.c.l.b16 %v608
        %v696 = vunpack.c.h.b16 %v608
        %v697 = vunpack.c.l.b16 %v609
        %v698 = vunpack.c.h.b16 %v609
        %v699 = vunpack.c.l.b16 %v610
        %v700 = vunpack.c.h.b16 %v610
        %v701 = vunpack.c.l.b16 %v611
        %v702 = vunpack.c.h.b16 %v611
        %v703 = vunpack.c.l.b16 %v612
        %v704 = vunpack.c.h.b16 %v612
        %v705 = vunpack.c.l.b16 %v613
        %v706 = vunpack.c.h.b16 %v613
        %v707 = vunpack.c.l.b16 %v614
        %v708 = vunpack.c.h.b16 %v614
        %v709 = vunpack.c.l.b16 %v615
        %v710 = vunpack.c.h.b16 %v615
        %v711 = vunpack.c.l.b16 %v616
        %v712 = vunpack.c.h.b16 %v616
        %v713 = vpack.c.b16 %v651, %v649
        %v714 = vpack.c.b16 %v652, %v650
        %v715 = vpack.c.b16 %v655, %v653
        %v716 = vpack.c.b16 %v656, %v654
        %v717 = vpack.c.b16 %v659, %v657
        %v718 = vpack.c.b16 %v660, %v658
        %v719 = vpack.c.b16 %v663, %v661
        %v720 = vpack.c.b16 %v664, %v662
        %v721 = vpack.c.b16 %v667, %v665
        %v722 = vpack.c.b16 %v668, %v666
        %v723 = vpack.c.b16 %v671, %v669
        %v724 = vpack.c.b16 %v672, %v670
        %v725 = vpack.c.b16 %v675, %v673
        %v726 = vpack.c.b16 %v676, %v674
        %v727 = vpack.c.b16 %v679, %v677
        %v728 = vpack.c.b16 %v680, %v678
        %v729 = vpack.c.b16 %v683, %v681
        %v730 = vpack.c.b16 %v684, %v682
        %v731 = vpack.c.b16 %v687, %v685
        %v732 = vpack.c.b16 %v688, %v686
        %v733 = vpack.c.b16 %v691, %v689
        %v734 = vpack.c.b16 %v692, %v690
        %v735 = vpack.c.b16 %v695, %v693
        %v736 = vpack.c.b16 %v696, %v694
        %v737 = vpack.c.b16 %v699, %v697
        %v738 = vpack.c.b16 %v700, %v698
        %v739 = vpack.c.b16 %v703, %v701
        %v740 = vpack.c.b16 %v704, %v702
        %v741 = vpack.c.b16 %v707, %v705
        %v742 = vpack.c.b16 %v708, %v706
        %v743 = vpack.c.b16 %v711, %v709
        %v744 = vpack.c.b16 %v712, %v710
        %777 = vmatprep.subr.bf16.mxu0 %v714
        %778 = vmatpush1.bf16.xpose.msra.mxu0 %v713
        %779 = vmatprep.subr.bf16.mxu0 %v716
        %780 = vmatpush1.bf16.xpose.msra.mxu0 %v715
        %781 = vmatprep.subr.bf16.mxu0 %v718
        %782 = vmatpush1.bf16.xpose.msra.mxu0 %v717
        %783 = vmatprep.subr.bf16.mxu0 %v720
        %784 = vmatpush1.bf16.xpose.msra.mxu0 %v719
        %785 = vmatprep.subr.bf16.mxu0 %v722
        %786 = vmatpush1.bf16.xpose.msra.mxu0 %v721
        %787 = vmatprep.subr.bf16.mxu0 %v724
        %788 = vmatpush1.bf16.xpose.msra.mxu0 %v723
        %789 = vmatprep.subr.bf16.mxu0 %v726
        %790 = vmatpush1.bf16.xpose.msra.mxu0 %v725
        %791 = vmatprep.subr.bf16.mxu0 %v728
        %792 = vmatpush1.bf16.xpose.msra.mxu0 %v727
        %793 = vmatprep.subr.bf16.mxu0 %v730
        %794 = vmatpush1.bf16.xpose.msra.mxu0 %v729
        %795 = vmatprep.subr.bf16.mxu0 %v732
        %796 = vmatpush1.bf16.xpose.msra.mxu0 %v731
        %797 = vmatprep.subr.bf16.mxu0 %v734
        %798 = vmatpush1.bf16.xpose.msra.mxu0 %v733
        %799 = vmatprep.subr.bf16.mxu0 %v736
        %800 = vmatpush1.bf16.xpose.msra.mxu0 %v735
        %801 = vmatprep.subr.bf16.mxu0 %v738
        %802 = vmatpush1.bf16.xpose.msra.mxu0 %v737
        %803 = vmatprep.subr.bf16.mxu0 %v740
        %804 = vmatpush1.bf16.xpose.msra.mxu0 %v739
        %805 = vmatprep.subr.bf16.mxu0 %v742
        %806 = vmatpush1.bf16.xpose.msra.mxu0 %v741
        %807 = vmatprep.subr.bf16.mxu0 %v744
        %808 = vmatpush1.bf16.xpose.msra.mxu0 %v743
        %809 = vmatprep.mubr.bf16.mxu0 %v379
        %810 = vmatmul.mubr.bf16.gmra.mrb[0].mxu0 %v378
        %v811 = vpop.f32.mrb[0].mxu0
        %v812 = vadd.f32 0.0, %v811
        %v813 = vpop.f32.mrb[0].mxu0
        %v814 = vadd.f32 0.0, %v813
        %v815 = vpop.f32.mrb[0].mxu0
        %v816 = vadd.f32 0.0, %v815
        %v817 = vpop.f32.mrb[0].mxu0
        %v818 = vadd.f32 0.0, %v817
        %819 = vdwg.mxu0
        %v820 = vxor.u32 %v577, 2147483648
        %v821 = vxor.u32 %v579, 2147483648
        %v822 = vxor.u32 %v581, 2147483648
        %v823 = vxor.u32 %v583, 2147483648
        %v824 = vmul.f32 %v820, 1.442695
        %v825 = vpow.pop %v824
        %v826 = vmul.f32 %v821, 1.442695
        %v827 = vpow.pop %v826
        %v828 = vmul.f32 %v822, 1.442695
        %v829 = vpow.pop %v828
        %v830 = vmul.f32 %v823, 1.442695
        %v831 = vpow.pop %v830
        %v832 = vadd.f32 %v825, 1.0
        %v833 = vadd.f32 %v827, 1.0
        %v834 = vadd.f32 %v829, 1.0
        %v835 = vadd.f32 %v831, 1.0
        %v836 = vrcp.pop %v832
        %v837 = vmul.f32 1.0, %v836
        %v838 = vrcp.pop %v833
        %v839 = vmul.f32 1.0, %v838
        %v840 = vrcp.pop %v834
        %v841 = vmul.f32 1.0, %v840
        %v842 = vrcp.pop %v835
        %v843 = vmul.f32 1.0, %v842
        %v844 = vmul.f32 %v577, %v837
        %v845 = vmul.f32 %v579, %v839
        %v846 = vmul.f32 %v581, %v841
        %v847 = vmul.f32 %v583, %v843
        %v848 = vmul.f32 %v844, %v812
        %v849 = vmul.f32 %v845, %v814
        %v850 = vmul.f32 %v846, %v816
        %v851 = vmul.f32 %v847, %v818
        %v852 = vpack.c.bf16 %v850, %v848
        %v853 = vpack.c.bf16 %v851, %v849
        %v854 = vld [vmem:[#allocation2] sm:$0xff]
        %v855 = vld [vmem:[#allocation2 + $0x8] sm:$0xff]
        %v856 = vld [vmem:[#allocation2 + $0x10] sm:$0xff]
        %v857 = vld [vmem:[#allocation2 + $0x18] sm:$0xff]
        %v858 = vld [vmem:[%s295] sm:$0xff]
        %v859 = vld [vmem:[%s295 + $0x8] sm:$0xff]
        %v860 = vld [vmem:[%s295 + $0x10] sm:$0xff]
        %v861 = vld [vmem:[%s295 + $0x18] sm:$0xff]
        %v862 = vld [vmem:[%s295 + $0x20] sm:$0xff]
        %v863 = vld [vmem:[%s295 + $0x28] sm:$0xff]
        %v864 = vld [vmem:[%s295 + $0x30] sm:$0xff]
        %v865 = vld [vmem:[%s295 + $0x38] sm:$0xff]
        %v866 = vld [vmem:[%s295 + $0x40] sm:$0xff]
        %v867 = vld [vmem:[%s295 + $0x48] sm:$0xff]
        %v868 = vld [vmem:[%s295 + $0x50] sm:$0xff]
        %v869 = vld [vmem:[%s295 + $0x58] sm:$0xff]
        %v870 = vld [vmem:[%s295 + $0x60] sm:$0xff]
        %v871 = vld [vmem:[%s295 + $0x68] sm:$0xff]
        %v872 = vld [vmem:[%s295 + $0x70] sm:$0xff]
        %v873 = vld [vmem:[%s295 + $0x78] sm:$0xff]
        %v874 = vld [vmem:[%s295 + $0x80] sm:$0xff]
        %v875 = vld [vmem:[%s295 + $0x88] sm:$0xff]
        %v876 = vld [vmem:[%s295 + $0x90] sm:$0xff]
        %v877 = vld [vmem:[%s295 + $0x98] sm:$0xff]
        %v878 = vld [vmem:[%s295 + $0xa0] sm:$0xff]
        %v879 = vld [vmem:[%s295 + $0xa8] sm:$0xff]
        %v880 = vld [vmem:[%s295 + $0xb0] sm:$0xff]
        %v881 = vld [vmem:[%s295 + $0xb8] sm:$0xff]
        %v882 = vld [vmem:[%s295 + $0xc0] sm:$0xff]
        %v883 = vld [vmem:[%s295 + $0xc8] sm:$0xff]
        %v884 = vld [vmem:[%s295 + $0xd0] sm:$0xff]
        %v885 = vld [vmem:[%s295 + $0xd8] sm:$0xff]
        %v886 = vld [vmem:[%s295 + $0xe0] sm:$0xff]
        %v887 = vld [vmem:[%s295 + $0xe8] sm:$0xff]
        %v888 = vld [vmem:[%s295 + $0xf0] sm:$0xff]
        %v889 = vld [vmem:[%s295 + $0xf8] sm:$0xff]
        %v922 = vunpack.c.l.b16 %v858
        %v923 = vunpack.c.h.b16 %v858
        %v924 = vunpack.c.l.b16 %v859
        %v925 = vunpack.c.h.b16 %v859
        %v926 = vunpack.c.l.b16 %v860
        %v927 = vunpack.c.h.b16 %v860
        %v928 = vunpack.c.l.b16 %v861
        %v929 = vunpack.c.h.b16 %v861
        %v930 = vunpack.c.l.b16 %v862
        %v931 = vunpack.c.h.b16 %v862
        %v932 = vunpack.c.l.b16 %v863
        %v933 = vunpack.c.h.b16 %v863
        %v934 = vunpack.c.l.b16 %v864
        %v935 = vunpack.c.h.b16 %v864
        %v936 = vunpack.c.l.b16 %v865
        %v937 = vunpack.c.h.b16 %v865
        %v938 = vunpack.c.l.b16 %v866
        %v939 = vunpack.c.h.b16 %v866
        %v940 = vunpack.c.l.b16 %v867
        %v941 = vunpack.c.h.b16 %v867
        %v942 = vunpack.c.l.b16 %v868
        %v943 = vunpack.c.h.b16 %v868
        %v944 = vunpack.c.l.b16 %v869
        %v945 = vunpack.c.h.b16 %v869
        %v946 = vunpack.c.l.b16 %v870
        %v947 = vunpack.c.h.b16 %v870
        %v948 = vunpack.c.l.b16 %v871
        %v949 = vunpack.c.h.b16 %v871
        %v950 = vunpack.c.l.b16 %v872
        %v951 = vunpack.c.h.b16 %v872
        %v952 = vunpack.c.l.b16 %v873
        %v953 = vunpack.c.h.b16 %v873
        %v954 = vunpack.c.l.b16 %v874
        %v955 = vunpack.c.h.b16 %v874
        %v956 = vunpack.c.l.b16 %v875
        %v957 = vunpack.c.h.b16 %v875
        %v958 = vunpack.c.l.b16 %v876
        %v959 = vunpack.c.h.b16 %v876
        %v960 = vunpack.c.l.b16 %v877
        %v961 = vunpack.c.h.b16 %v877
        %v962 = vunpack.c.l.b16 %v878
        %v963 = vunpack.c.h.b16 %v878
        %v964 = vunpack.c.l.b16 %v879
        %v965 = vunpack.c.h.b16 %v879
        %v966 = vunpack.c.l.b16 %v880
        %v967 = vunpack.c.h.b16 %v880
        %v968 = vunpack.c.l.b16 %v881
        %v969 = vunpack.c.h.b16 %v881
        %v970 = vunpack.c.l.b16 %v882
        %v971 = vunpack.c.h.b16 %v882
        %v972 = vunpack.c.l.b16 %v883
        %v973 = vunpack.c.h.b16 %v883
        %v974 = vunpack.c.l.b16 %v884
        %v975 = vunpack.c.h.b16 %v884
        %v976 = vunpack.c.l.b16 %v885
        %v977 = vunpack.c.h.b16 %v885
        %v978 = vunpack.c.l.b16 %v886
        %v979 = vunpack.c.h.b16 %v886
        %v980 = vunpack.c.l.b16 %v887
        %v981 = vunpack.c.h.b16 %v887
        %v982 = vunpack.c.l.b16 %v888
        %v983 = vunpack.c.h.b16 %v888
        %v984 = vunpack.c.l.b16 %v889
        %v985 = vunpack.c.h.b16 %v889
        %v986 = vpack.c.b16 %v924, %v922
        %v987 = vpack.c.b16 %v925, %v923
        %v988 = vpack.c.b16 %v928, %v926
        %v989 = vpack.c.b16 %v929, %v927
        %v990 = vpack.c.b16 %v932, %v930
        %v991 = vpack.c.b16 %v933, %v931
        %v992 = vpack.c.b16 %v936, %v934
        %v993 = vpack.c.b16 %v937, %v935
        %v994 = vpack.c.b16 %v940, %v938
        %v995 = vpack.c.b16 %v941, %v939
        %v996 = vpack.c.b16 %v944, %v942
        %v997 = vpack.c.b16 %v945, %v943
        %v998 = vpack.c.b16 %v948, %v946
        %v999 = vpack.c.b16 %v949, %v947
        %v1000 = vpack.c.b16 %v952, %v950
        %v1001 = vpack.c.b16 %v953, %v951
        %v1002 = vpack.c.b16 %v956, %v954
        %v1003 = vpack.c.b16 %v957, %v955
        %v1004 = vpack.c.b16 %v960, %v958
        %v1005 = vpack.c.b16 %v961, %v959
        %v1006 = vpack.c.b16 %v964, %v962
        %v1007 = vpack.c.b16 %v965, %v963
        %v1008 = vpack.c.b16 %v968, %v966
        %v1009 = vpack.c.b16 %v969, %v967
        %v1010 = vpack.c.b16 %v972, %v970
        %v1011 = vpack.c.b16 %v973, %v971
        %v1012 = vpack.c.b16 %v976, %v974
        %v1013 = vpack.c.b16 %v977, %v975
        %v1014 = vpack.c.b16 %v980, %v978
        %v1015 = vpack.c.b16 %v981, %v979
        %v1016 = vpack.c.b16 %v984, %v982
        %v1017 = vpack.c.b16 %v985, %v983
        %1050 = vmatprep.subr.bf16.mxu0 %v987
        %1051 = vmatpush1.bf16.msra.mxu0 %v986
        %1052 = vmatprep.subr.bf16.mxu0 %v989
        %1053 = vmatpush1.bf16.msra.mxu0 %v988
        %1054 = vmatprep.subr.bf16.mxu0 %v991
        %1055 = vmatpush1.bf16.msra.mxu0 %v990
        %1056 = vmatprep.subr.bf16.mxu0 %v993
        %1057 = vmatpush1.bf16.msra.mxu0 %v992
        %1058 = vmatprep.subr.bf16.mxu0 %v995
        %1059 = vmatpush1.bf16.msra.mxu0 %v994
        %1060 = vmatprep.subr.bf16.mxu0 %v997
        %1061 = vmatpush1.bf16.msra.mxu0 %v996
        %1062 = vmatprep.subr.bf16.mxu0 %v999
        %1063 = vmatpush1.bf16.msra.mxu0 %v998
        %1064 = vmatprep.subr.bf16.mxu0 %v1001
        %1065 = vmatpush1.bf16.msra.mxu0 %v1000
        %1066 = vmatprep.subr.bf16.mxu0 %v1003
        %1067 = vmatpush1.bf16.msra.mxu0 %v1002
        %1068 = vmatprep.subr.bf16.mxu0 %v1005
        %1069 = vmatpush1.bf16.msra.mxu0 %v1004
        %1070 = vmatprep.subr.bf16.mxu0 %v1007
        %1071 = vmatpush1.bf16.msra.mxu0 %v1006
        %1072 = vmatprep.subr.bf16.mxu0 %v1009
        %1073 = vmatpush1.bf16.msra.mxu0 %v1008
        %1074 = vmatprep.subr.bf16.mxu0 %v1011
        %1075 = vmatpush1.bf16.msra.mxu0 %v1010
        %1076 = vmatprep.subr.bf16.mxu0 %v1013
        %1077 = vmatpush1.bf16.msra.mxu0 %v1012
        %1078 = vmatprep.subr.bf16.mxu0 %v1015
        %1079 = vmatpush1.bf16.msra.mxu0 %v1014
        %1080 = vmatprep.subr.bf16.mxu0 %v1017
        %1081 = vmatpush1.bf16.msra.mxu0 %v1016
        %1082 = vmatprep.mubr.bf16.mxu0 %v853
        %1083 = vmatmul.mubr.bf16.gmra.mrb[0].mxu0 %v852
        %v1084 = vpop.f32.mrb[0].mxu0
        %v1085 = vadd.f32 0.0, %v1084
        %v1086 = vpop.f32.mrb[0].mxu0
        %v1087 = vadd.f32 0.0, %v1086
        %v1088 = vpop.f32.mrb[0].mxu0
        %v1089 = vadd.f32 0.0, %v1088
        %v1090 = vpop.f32.mrb[0].mxu0
        %v1091 = vadd.f32 0.0, %v1090
        %1092 = vdwg.mxu0
        %v1093 = vadd.f32 %v854, %v1085
        %v1094 = vadd.f32 %v855, %v1087
        %v1095 = vadd.f32 %v856, %v1089
        %v1096 = vadd.f32 %v857, %v1091
        %1097 = vst [vmem:[#allocation2] sm:$0xff] %v1093
        %1098 = vst [vmem:[#allocation2 + $0x8] sm:$0xff] %v1094
        %1099 = vst [vmem:[#allocation2 + $0x10] sm:$0xff] %v1095
        %1100 = vst [vmem:[#allocation2 + $0x18] sm:$0xff] %v1096
        %p1101 = scmp.eq.s32.totalorder %s28, 1
        // Predicated region
        $region57: #{deepseek_v3_mlp_forward.1} parent=35 // pred_check
          %p1102 = pneg %p1101
        $region58: #{deepseek_v3_mlp_forward.1} parent=35 // pred_check_branch
          %1104 = sbr.rel (%p1102) target = $region60
        $region59: #{deepseek_v3_mlp_forward.1} parent=35 // pred_region
          %v1105 = vld [vmem:[#allocation2] sm:$0xff]
          %v1106 = vld [vmem:[#allocation2 + $0x8] sm:$0xff]
          %v1107 = vld [vmem:[#allocation2 + $0x10] sm:$0xff]
          %v1108 = vld [vmem:[#allocation2 + $0x18] sm:$0xff]
          %v1109 = vpack.c.bf16 %v1107, %v1105
          %v1110 = vpack.c.bf16 %v1108, %v1106
          %v1113 = vunpack.c.l.b16 %v1109
          %v1114 = vunpack.c.l.b16 %v1110
          %v1115 = vunpack.c.h.b16 %v1109
          %v1116 = vunpack.c.h.b16 %v1110
          %v1117 = vpack.c.b16 %v1114, %v1113
          %v1118 = vpack.c.b16 %v1116, %v1115
          %1121 = vst [vmem:[#allocation11] sm:$0xff] %v1117
          %1122 = vst [vmem:[#allocation11 + $0x8] sm:$0xff] %v1118
        $region60: #{deepseek_v3_mlp_forward.1} parent=35 // pred_fallthru
          _
        // Predicated region
        $region61: #{deepseek_v3_mlp_forward.1} parent=35 // pred_check
          %p1123 = pneg %p157
        $region62: #{deepseek_v3_mlp_forward.1} parent=35 // pred_check_branch
          %1125 = sbr.rel (%p1123) target = $region64
        $region63: #{deepseek_v3_mlp_forward.1} parent=35 // pred_region
          %s1126 = smul.u32 2, %s27
          %s1128 = ssub.s32 256, 256
          %1129 = vsyncadd [#allocation5], %s1128
          %s1130 = smul.addr %s1126, 2
          %s1131 = smul.addr %s1130, 64
          %s1132 = scalar_lea.hbm %s4, %s1131
          %s1133 = sshll.u32 [#allocation11], 4
          %s1134 = int_to_ptr.vmem [resolvable:$true] %s1133
          %1139 = dma.vmem_to_hbm [thread:$0]  %s1134, 256, %s1132, [#allocation5], 128, 128, 8
        $region64: #{deepseek_v3_mlp_forward.1} parent=35 // pred_fallthru
          _
        // Predicated region
        $region65: #{deepseek_v3_mlp_forward.1} parent=35 // pred_check
          %p1140 = pneg %p157
        $region66: #{deepseek_v3_mlp_forward.1} parent=35 // pred_check_branch
          %1142 = sbr.rel (%p1140) target = $region68
        $region67: #{deepseek_v3_mlp_forward.1} parent=35 // pred_region
          %1143 = dma.done [#allocation5], 256
        $region68: #{deepseek_v3_mlp_forward.1} parent=35 // pred_fallthru
          _
      $region36: #{deepseek_v3_mlp_forward.1} parent=5 // pred_fallthru
        _
      %p1144 = scmp.le.s32.totalorder 2, %s18
      // Predicated region
      $region69: #{deepseek_v3_mlp_forward.1} parent=5 // pred_check
        %p1145 = pneg %p1144
      $region70: #{deepseek_v3_mlp_forward.1} parent=5 // pred_check_branch
        %1147 = sbr.rel (%p1145) target = $region72
      $region71: #{deepseek_v3_mlp_forward.1} parent=5 // pred_region
        %s1148 = ssub.s32 %s18, 2
      $region72: #{deepseek_v3_mlp_forward.1} parent=5 // pred_fallthru
        _
    $region6: #{deepseek_v3_mlp_forward.1} parent=1 // loop_footer
      %s22 = sadd.s32 1, %s18
    $region7: #{deepseek_v3_mlp_forward.1} parent=1 // loop_footer_branch
      %17 = sbr.rel target = $region3
    $region8: #{deepseek_v3_mlp_forward.1} parent=1 // loop_exit
      _
    %1149 = vsyncpa [#allocation4], 1
    %s1150 = scalar_lea.sflag [#allocation4], 1
    %1151 = vsyncpa %s1150, 1
    %1152 = vsyncpa [#allocation7], 1
    %s1153 = scalar_lea.sflag [#allocation7], 1
    %1154 = vsyncpa %s1153, 1
    %1155 = vsyncpa [#allocation10], 1
    %s1156 = scalar_lea.sflag [#allocation10], 1
    %1157 = vsyncpa %s1156, 1
    %1158 = vsyncpa [#allocation5], 1
    %s1159 = scalar_lea.sflag [#allocation5], 1
    %1160 = vsyncpa %s1159, 1

</llo_original>
